<compile_context>
chip_gen: v7x
topology: tpu7x:2x2x1
jax: 0.10.0
libtpu: 0.0.40
codegen_flags: <defaults>
</compile_context>

<pallas_src>
import math

import jax
import jax.numpy as jnp
from jax import lax
from jax.experimental import pallas as pl
from jax.experimental.pallas import tpu as pltpu


EPS = 1e-5  # nn.LayerNorm default eps


def _patch_merging_kernel(x_ref, we_ref, wo_ref, bias_ref, o_ref):
    # x_ref block: (tr, 2, W/2, 2C).  Even-h rows carry channels [x0 | x2],
    # odd-h rows carry [x1 | x3] (weight rows were permuted to match in the
    # wrapper; gamma is folded into the weights, beta@W^T is bias_ref).
    tr, _, wh, c2 = x_ref.shape
    rows = tr * wh
    inv_4c = 1.0 / (2.0 * c2)

    xe = x_ref[:, 0, :, :].reshape(rows, c2).astype(jnp.float32)
    xo = x_ref[:, 1, :, :].reshape(rows, c2).astype(jnp.float32)

    # LayerNorm statistics over the full merged 4C channel axis (f32).
    total = jnp.sum(xe, axis=-1, keepdims=True) + jnp.sum(xo, axis=-1, keepdims=True)
    mean = total * inv_4c
    ce = xe - mean
    co = xo - mean
    var = (jnp.sum(ce * ce, axis=-1, keepdims=True)
           + jnp.sum(co * co, axis=-1, keepdims=True)) * inv_4c
    inv = lax.rsqrt(var + EPS)
    xne = ce * inv
    xno = co * inv

    # Linear(4C -> 2C, no bias) as a sum of two half-K matmuls on the MXU,
    # with the LN affine already folded into the weights / bias.
    acc = jnp.dot(xne.astype(we_ref.dtype), we_ref[...],
                  preferred_element_type=jnp.float32)
    acc = acc + jnp.dot(xno.astype(wo_ref.dtype), wo_ref[...],
                        preferred_element_type=jnp.float32)
    acc = acc + bias_ref[...]
    o_ref[...] = acc.astype(o_ref.dtype)


def patch_merging(x, gamma, beta, w_reduction, input_resolution, *, tm=None):
    """Forward pass of PatchMerging.

    Args:
      x: (B, H*W, C) input features.
      gamma, beta: (4C,) LayerNorm affine params.
      w_reduction: (2C, 4C) Linear weight (PyTorch [out, in] convention, no bias).
      input_resolution: (H, W).
      tm: target output rows per grid step (defaults: 512 f32 / 1024 bf16).
    Returns:
      (B, H*W//4, 2C)
    """
    H, W = input_resolution
    B, L, C = x.shape
    assert L == H * W, "input feature has wrong size"
    assert H % 2 == 0 and W % 2 == 0, f"x size ({H}*{W}) are not even."

    Hh, Wh = H // 2, W // 2
    Nsr = B * Hh                # "super-rows": each yields Wh merged patches
    M = Nsr * Wh                # total merged patches
    C2 = 2 * C
    Cout = 2 * C
    Cp = ((Cout + 127) // 128) * 128   # lane-dense padded output width

    # Free row-major view: (B, H*W, C) -> (B*H/2, 2, W/2, 2C).  No data movement.
    xr = x.reshape(Nsr, 2, Wh, C2)

    # ---- Fold LayerNorm affine into the reduction weight (done once, f32):
    #   y = ((x-mean)*inv) @ (gamma * W^T) + beta @ W^T
    # Then split the (gamma-scaled) weight ROWS into the (even-h, odd-h)
    # channel halves the kernel sees:
    #   even-h half = [x0 | x2]  -> reference channels [0:C] ++ [2C:3C]
    #   odd-h  half = [x1 | x3]  -> reference channels [C:2C] ++ [3C:4C]
    gamma = gamma.astype(jnp.float32)
    beta = beta.astype(jnp.float32)
    wT = w_reduction.astype(jnp.float32).T                 # (4C, 2C): y = xn @ wT
    w_scaled = wT * gamma[:, None]                         # gamma folded into rows
    bias = (beta @ wT).reshape(1, Cout)                    # beta @ W^T, f32

    mxu_dtype = jnp.bfloat16 if x.dtype == jnp.bfloat16 else x.dtype
    w_e = jnp.concatenate([w_scaled[0:C], w_scaled[2 * C:3 * C]], axis=0)      # (2C, 2C)
    w_o = jnp.concatenate([w_scaled[C:2 * C], w_scaled[3 * C:4 * C]], axis=0)  # (2C, 2C)
    if Cp != Cout:
        pad_cols = ((0, 0), (0, Cp - Cout))
        w_e = jnp.pad(w_e, pad_cols)
        w_o = jnp.pad(w_o, pad_cols)
        bias = jnp.pad(bias, pad_cols)
    w_e = w_e.astype(mxu_dtype)
    w_o = w_o.astype(mxu_dtype)
    bias = bias.astype(jnp.float32)

    # ---- Row tiling: tm output rows per grid step. Big tiles amortize the
    # ~0.35us/step pipeline overhead; padding replaces any M % tm assert.
    # For realistic Swin sizes this still leaves dozens of grid steps, which
    # the "parallel" axis shards across v7x's two TensorCores. ----
    if tm is None:
        tm = 1024 if x.dtype == jnp.bfloat16 else 512
    sub = 16 if x.dtype == jnp.bfloat16 else 8
    tr = max(1, min(Nsr, tm // Wh if tm >= Wh else 1))
    if tr < Nsr:
        unit = sub // math.gcd(Wh, sub)     # smallest tr with (tr*Wh) % sub == 0
        tr = min(Nsr, max(unit, (tr // unit) * unit))
    pad_sr = (-Nsr) % tr
    if pad_sr:
        xr = jnp.pad(xr, ((0, pad_sr), (0, 0), (0, 0), (0, 0)))
    Nsr_p = Nsr + pad_sr
    grid = (Nsr_p // tr,)
    rows_blk = tr * Wh

    # VMEM budget check (v7x is the tight one: 32 MiB scoped / 64 MiB physical).
    xb = jnp.dtype(x.dtype).itemsize
    wb = jnp.dtype(mxu_dtype).itemsize
    vmem_est = (2 * (tr * 2 * Wh * C2 * xb)            # double-buffered x tiles
                + 2 * (rows_blk * Cp * xb)             # double-buffered out tiles
                + 2 * (2 * C2 * Cp * wb + Cp * 4)      # (small) invariant params
                + 6 * rows_blk * C2 * 4)               # f32 compute temporaries
    vmem_limit = None
    if vmem_est > 30 * 1024 * 1024:
        vmem_limit = int(min(vmem_est * 5 // 4, 60 * 1024 * 1024))

    out = pl.pallas_call(
        _patch_merging_kernel,
        out_shape=jax.ShapeDtypeStruct((Nsr_p * Wh, Cp), x.dtype),
        grid_spec=pltpu.PrefetchScalarGridSpec(
            num_scalar_prefetch=0,
            grid=grid,
            in_specs=[
                pl.BlockSpec((tr, 2, Wh, C2), lambda r: (r, 0, 0, 0)),  # x rows
                pl.BlockSpec((C2, Cp), lambda r: (0, 0)),   # gamma-folded W (even-h half)
                pl.BlockSpec((C2, Cp), lambda r: (0, 0)),   # gamma-folded W (odd-h half)
                pl.BlockSpec((1, Cp), lambda r: (0, 0)),    # beta @ W^T bias
            ],
            out_specs=pl.BlockSpec((rows_blk, Cp), lambda r: (r, 0)),
        ),
        compiler_params=pltpu.CompilerParams(
            dimension_semantics=("parallel",),
            vmem_limit_bytes=vmem_limit,
        ),
    )(xr, w_e, w_o, bias)

    return out[:M, :Cout].reshape(B, L // 4, Cout)


def _reference(x, gamma, beta, w_reduction, input_resolution):
    """Pure-JAX reference mirroring the PyTorch forward."""
    H, W = input_resolution
    B, L, C = x.shape
    xv = x.reshape(B, H, W, C)
    x0 = xv[:, 0::2, 0::2, :]
    x1 = xv[:, 1::2, 0::2, :]
    x2 = xv[:, 0::2, 1::2, :]
    x3 = xv[:, 1::2, 1::2, :]
    x4 = jnp.concatenate([x0, x1, x2, x3], axis=-1).reshape(B, -1, 4 * C)
    mean = jnp.mean(x4, axis=-1, keepdims=True)
    var = jnp.mean((x4 - mean) ** 2, axis=-1, keepdims=True)
    xn = (x4 - mean) / jnp.sqrt(var + EPS) * gamma + beta
    return jnp.einsum("blk,ok->blo", xn, w_reduction)


if __name__ == "__main__":
    # Small shapes consistent with the module: dim=32, input_resolution=(16, 16), batch=2.
    B, H, W, dim = 2, 16, 16, 32
    key = jax.random.PRNGKey(0)
    kx, kg, kb, kw = jax.random.split(key, 4)

    x = jax.random.normal(kx, (B, H * W, dim), dtype=jnp.float32)
    # Deterministic parameter init (synthetic, not a checkpoint load).
    gamma = 1.0 + 0.02 * jax.random.normal(kg, (4 * dim,), dtype=jnp.float32)
    beta = 0.02 * jax.random.normal(kb, (4 * dim,), dtype=jnp.float32)
    w_reduction = 0.05 * jax.random.normal(kw, (2 * dim, 4 * dim), dtype=jnp.float32)

    out = patch_merging(x, gamma, beta, w_reduction, (H, W))
    out = jax.block_until_ready(out)

    ref = _reference(x, gamma, beta, w_reduction, (H, W))
    assert out.shape == (B, H * W // 4, 2 * dim), out.shape
    max_err = float(jnp.max(jnp.abs(out - ref)))
    assert jnp.allclose(out, ref, atol=1e-4, rtol=1e-4), max_err

    print("KERNEL_OK")
</pallas_src>

<mosaic_0001>
module attributes {stable_mosaic.version = 11 : i64} {
  func.func @_patch_merging_kernel(%arg0: i32, %arg1: memref<16x2x8x64xf32, #tpu.memory_space<vmem>>, %arg2: memref<64x128xf32, #tpu.memory_space<vmem>>, %arg3: memref<64x128xf32, #tpu.memory_space<vmem>>, %arg4: memref<1x128xf32, #tpu.memory_space<vmem>>, %arg5: memref<128x128xf32, #tpu.memory_space<vmem>>) attributes {dimension_semantics = [#tpu.dimension_semantics<parallel>], iteration_bounds = array<i64: 1>, scalar_prefetch = 0 : i64, scratch_operands = 0 : i64, tpu.core_type = #tpu.core_type<tc>, window_params = [{transform_indices = @transform_0, window_bounds = array<i64: 16, 2, 8, 64>}, {pipeline_mode = #tpu.pipeline_mode<synchronous>, transform_indices = @transform_1, window_bounds = array<i64: 64, 128>}, {pipeline_mode = #tpu.pipeline_mode<synchronous>, transform_indices = @transform_2, window_bounds = array<i64: 64, 128>}, {pipeline_mode = #tpu.pipeline_mode<synchronous>, transform_indices = @transform_3, window_bounds = array<i64: 1, 128>}, {transform_indices = @transform_4, window_bounds = array<i64: 128, 128>}]} {
    %c0 = arith.constant 0 : index
    %c0_0 = arith.constant 0 : index
    %c0_1 = arith.constant 0 : index
    %c0_2 = arith.constant 0 : index
    %0 = vector.load %arg1[%c0, %c0_0, %c0_1, %c0_2] : memref<16x2x8x64xf32, #tpu.memory_space<vmem>>, vector<16x1x8x64xf32>
    %1 = vector.shape_cast %0 : vector<16x1x8x64xf32> to vector<16x8x64xf32>
    %2 = vector.shape_cast %1 : vector<16x8x64xf32> to vector<128x64xf32>
    %c0_3 = arith.constant 0 : index
    %c1 = arith.constant 1 : index
    %c0_4 = arith.constant 0 : index
    %c0_5 = arith.constant 0 : index
    %3 = vector.load %arg1[%c0_3, %c1, %c0_4, %c0_5] : memref<16x2x8x64xf32, #tpu.memory_space<vmem>>, vector<16x1x8x64xf32>
    %4 = vector.shape_cast %3 : vector<16x1x8x64xf32> to vector<16x8x64xf32>
    %5 = vector.shape_cast %4 : vector<16x8x64xf32> to vector<128x64xf32>
    %cst = arith.constant dense<0.000000e+00> : vector<128xf32>
    %6 = vector.multi_reduction <add>, %2, %cst [1] : vector<128x64xf32> to vector<128xf32>
    %7 = vector.shape_cast %6 : vector<128xf32> to vector<128x1xf32>
    %cst_6 = arith.constant dense<0.000000e+00> : vector<128xf32>
    %8 = vector.multi_reduction <add>, %5, %cst_6 [1] : vector<128x64xf32> to vector<128xf32>
    %9 = vector.shape_cast %8 : vector<128xf32> to vector<128x1xf32>
    %10 = arith.addf %7, %9 : vector<128x1xf32>
    %cst_7 = arith.constant 7.812500e-03 : f32
    %11 = vector.broadcast %cst_7 : f32 to vector<128x1xf32>
    %12 = arith.mulf %10, %11 : vector<128x1xf32>
    %13 = vector.broadcast %12 : vector<128x1xf32> to vector<128x64xf32>
    %14 = arith.subf %2, %13 : vector<128x64xf32>
    %15 = vector.broadcast %12 : vector<128x1xf32> to vector<128x64xf32>
    %16 = arith.subf %5, %15 : vector<128x64xf32>
    %17 = arith.mulf %14, %14 : vector<128x64xf32>
    %cst_8 = arith.constant dense<0.000000e+00> : vector<128xf32>
    %18 = vector.multi_reduction <add>, %17, %cst_8 [1] : vector<128x64xf32> to vector<128xf32>
    %19 = vector.shape_cast %18 : vector<128xf32> to vector<128x1xf32>
    %20 = arith.mulf %16, %16 : vector<128x64xf32>
    %cst_9 = arith.constant dense<0.000000e+00> : vector<128xf32>
    %21 = vector.multi_reduction <add>, %20, %cst_9 [1] : vector<128x64xf32> to vector<128xf32>
    %22 = vector.shape_cast %21 : vector<128xf32> to vector<128x1xf32>
    %23 = arith.addf %19, %22 : vector<128x1xf32>
    %cst_10 = arith.constant 7.812500e-03 : f32
    %24 = vector.broadcast %cst_10 : f32 to vector<128x1xf32>
    %25 = arith.mulf %23, %24 : vector<128x1xf32>
    %cst_11 = arith.constant 9.99999974E-6 : f32
    %26 = vector.broadcast %cst_11 : f32 to vector<128x1xf32>
    %27 = arith.addf %25, %26 : vector<128x1xf32>
    %28 = math.rsqrt %27 : vector<128x1xf32>
    %29 = vector.broadcast %28 : vector<128x1xf32> to vector<128x64xf32>
    %30 = arith.mulf %14, %29 : vector<128x64xf32>
    %31 = vector.broadcast %28 : vector<128x1xf32> to vector<128x64xf32>
    %32 = arith.mulf %16, %31 : vector<128x64xf32>
    %c0_12 = arith.constant 0 : index
    %c0_13 = arith.constant 0 : index
    %33 = vector.load %arg2[%c0_12, %c0_13] : memref<64x128xf32, #tpu.memory_space<vmem>>, vector<64x128xf32>
    %cst_14 = arith.constant dense<0.000000e+00> : vector<128x128xf32>
    %34 = tpu.matmul %30, %33, %cst_14 {dimension_numbers = #tpu.dot_dimension_numbers<[1], [0], [0], [1], [0, 0, 1, 1], [], []>} : vector<128x64xf32>, vector<64x128xf32>, vector<128x128xf32> -> vector<128x128xf32>
    %c0_15 = arith.constant 0 : index
    %c0_16 = arith.constant 0 : index
    %35 = vector.load %arg3[%c0_15, %c0_16] : memref<64x128xf32, #tpu.memory_space<vmem>>, vector<64x128xf32>
    %cst_17 = arith.constant dense<0.000000e+00> : vector<128x128xf32>
    %36 = tpu.matmul %32, %35, %cst_17 {dimension_numbers = #tpu.dot_dimension_numbers<[1], [0], [0], [1], [0, 0, 1, 1], [], []>} : vector<128x64xf32>, vector<64x128xf32>, vector<128x128xf32> -> vector<128x128xf32>
    %37 = arith.addf %34, %36 : vector<128x128xf32>
    %c0_18 = arith.constant 0 : index
    %c0_19 = arith.constant 0 : index
    %38 = vector.load %arg4[%c0_18, %c0_19] : memref<1x128xf32, #tpu.memory_space<vmem>>, vector<1x128xf32>
    %39 = vector.broadcast %38 : vector<1x128xf32> to vector<128x128xf32>
    %40 = arith.addf %37, %39 : vector<128x128xf32>
    %c0_20 = arith.constant 0 : index
    %c0_21 = arith.constant 0 : index
    %41 = vector.load %arg5[%c0_20, %c0_21] : memref<128x128xf32, #tpu.memory_space<vmem>>, vector<128x128xf32>
    tpu.vector_store %arg5[%c0_20, %c0_21], %40 {strides = array<i32>} : memref<128x128xf32, #tpu.memory_space<vmem>>, vector<128x128xf32>,
    return
  }
  func.func @transform_0(%arg0: i32) -> (i32, i32, i32, i32) {
    %c0_i32 = arith.constant 0 : i32
    %c0_i32_0 = arith.constant 0 : i32
    %c0_i32_1 = arith.constant 0 : i32
    %c0_i32_2 = arith.constant 0 : i32
    return %arg0, %c0_i32, %c0_i32_0, %c0_i32_1 : i32, i32, i32, i32
  }
  func.func @transform_1(%arg0: i32) -> (i32, i32) {
    %c0_i32 = arith.constant 0 : i32
    %c0_i32_0 = arith.constant 0 : i32
    %c0_i32_1 = arith.constant 0 : i32
    return %c0_i32, %c0_i32_0 : i32, i32
  }
  func.func @transform_2(%arg0: i32) -> (i32, i32) {
    %c0_i32 = arith.constant 0 : i32
    %c0_i32_0 = arith.constant 0 : i32
    %c0_i32_1 = arith.constant 0 : i32
    return %c0_i32, %c0_i32_0 : i32, i32
  }
  func.func @transform_3(%arg0: i32) -> (i32, i32) {
    %c0_i32 = arith.constant 0 : i32
    %c0_i32_0 = arith.constant 0 : i32
    %c0_i32_1 = arith.constant 0 : i32
    return %c0_i32, %c0_i32_0 : i32, i32
  }
  func.func @transform_4(%arg0: i32) -> (i32, i32) {
    %c0_i32 = arith.constant 0 : i32
    %c0_i32_0 = arith.constant 0 : i32
    return %arg0, %c0_i32 : i32, i32
  }
}

</mosaic_0001>

<llo_original>
// kernel: tpu_custom_call.1
$region0: #{tpu_custom_call.1}
  #allocation0 [shape = 'u32[]', space=smem, size = 0x4, offset = 0x4, fixed_abs, tag = 'smem constant byte address 0x4 - core index']
  #allocation1 [shape = 'u32[144,128]{1,0:T(1,128)}', space=vmem, size = 0x12000, scoped, tag = 'internal scratch']
  %s0 = inlined_call_operand.hbm [shape: f32[16,2,8,64], index: 0, kind: input, shape index: {}]
  %s1 = inlined_call_operand.hbm [shape: f32[64,128], index: 1, kind: input, shape index: {}]
  %s2 = inlined_call_operand.hbm [shape: f32[64,128], index: 2, kind: input, shape index: {}]
  %s3 = inlined_call_operand.vmem [shape: f32[1,128], index: 3, kind: input, shape index: {}]
  %s4 = inlined_call_operand.hbm [shape: f32[128,128], index: 4, kind: output, shape index: {}]
  %s5 = sld [smem:[#allocation0]]
  $region38: #{tpu_custom_call.1} parent=0
    _
  %s7 = ssub.s32 1, %s5
  %s8 = scalar_select 0, %s7, %s5
  $region1: #{tpu_custom_call.1} parent=0
    #allocation2 [shape = 'u8[131072]{0}', space=vmem, size = 0x20000, scoped, tag = 'input window, operand 0, single buffered']
    #allocation3 [shape = 's32[1]{0}', space=sflag, size = 0x4, scoped, tag = 'scoped memory for tpu_custom_call.1']
    #allocation4 [shape = 's32[1]{0}', space=sflag, size = 0x4, scoped, tag = 'scoped memory for tpu_custom_call.1']
    #allocation5 [shape = 'u8[32768]{0}', space=vmem, size = 0x8000, scoped, tag = 'input window, operand 1, single buffered']
    #allocation6 [shape = 's32[1]{0}', space=sflag, size = 0x4, scoped, tag = 'scoped memory for tpu_custom_call.1']
    #allocation7 [shape = 'u8[32768]{0}', space=vmem, size = 0x8000, scoped, tag = 'input window, operand 2, single buffered']
    #allocation8 [shape = 'u8[65536]{0}', space=vmem, size = 0x10000, scoped, tag = 'output window, operand 0, single buffered']
    %9 = vsyncpa [#allocation3], 0
    %10 = vsyncpa [#allocation6], 0
    %11 = vsyncpa [#allocation4], 0
    // Predicated region
    $region2: #{tpu_custom_call.1} parent=1 // pred_check
      _
    $region3: #{tpu_custom_call.1} parent=1 // pred_check_branch
      %13 = sbr.rel (0) target = $region5
    $region4: #{tpu_custom_call.1} parent=1 // pred_region
      %s15 = ssub.s32 4096, 4096
      %16 = vsyncadd [#allocation3], %s15
      %s17 = sshll.u32 [#allocation2], 4
      %s18 = int_to_ptr.vmem [resolvable:$true] %s17
      %23 = dma.hbm_to_vmem [thread:$0]  %s0, 4096, %s18, [#allocation3], 128, 128, 8
    $region5: #{tpu_custom_call.1} parent=1 // pred_fallthru
      _
    // Predicated region
    $region6: #{tpu_custom_call.1} parent=1 // pred_check
      _
    $region7: #{tpu_custom_call.1} parent=1 // pred_check_branch
      %25 = sbr.rel (0) target = $region9
    $region8: #{tpu_custom_call.1} parent=1 // pred_region
      %s27 = ssub.s32 1024, 1024
      %28 = vsyncadd [#allocation6], %s27
      %s29 = sshll.u32 [#allocation5], 4
      %s30 = int_to_ptr.vmem [resolvable:$true] %s29
      %35 = dma.hbm_to_vmem [thread:$0]  %s1, 1024, %s30, [#allocation6], 128, 128, 8
    $region9: #{tpu_custom_call.1} parent=1 // pred_fallthru
      _
    // Predicated region
    $region10: #{tpu_custom_call.1} parent=1 // pred_check
      _
    $region11: #{tpu_custom_call.1} parent=1 // pred_check_branch
      %37 = sbr.rel (0) target = $region13
    $region12: #{tpu_custom_call.1} parent=1 // pred_region
      %s39 = ssub.s32 1024, 1024
      %40 = vsyncadd [#allocation6], %s39
      %s41 = sshll.u32 [#allocation7], 4
      %s42 = int_to_ptr.vmem [resolvable:$true] %s41
      %47 = dma.hbm_to_vmem [thread:$0]  %s2, 1024, %s42, [#allocation6], 128, 128, 8
    $region13: #{tpu_custom_call.1} parent=1 // pred_fallthru
      _
    // Predicated region
    $region14: #{tpu_custom_call.1} parent=1 // pred_check
      _
    $region15: #{tpu_custom_call.1} parent=1 // pred_check_branch
      %49 = sbr.rel (0) target = $region17
    $region16: #{tpu_custom_call.1} parent=1 // pred_region
      _
    $region17: #{tpu_custom_call.1} parent=1 // pred_fallthru
      _
    // Predicated region
    $region18: #{tpu_custom_call.1} parent=1 // pred_check
      _
    $region19: #{tpu_custom_call.1} parent=1 // pred_check_branch
      %51 = sbr.rel (0) target = $region21
    $region20: #{tpu_custom_call.1} parent=1 // pred_region
      %52 = dma.done [#allocation3], 4096
    $region21: #{tpu_custom_call.1} parent=1 // pred_fallthru
      _
    // Predicated region
    $region22: #{tpu_custom_call.1} parent=1 // pred_check
      _
    $region23: #{tpu_custom_call.1} parent=1 // pred_check_branch
      %54 = sbr.rel (0) target = $region25
    $region24: #{tpu_custom_call.1} parent=1 // pred_region
      %55 = dma.done [#allocation6], 1024
    $region25: #{tpu_custom_call.1} parent=1 // pred_fallthru
      _
    // Predicated region
    $region26: #{tpu_custom_call.1} parent=1 // pred_check
      _
    $region27: #{tpu_custom_call.1} parent=1 // pred_check_branch
      %57 = sbr.rel (0) target = $region29
    $region28: #{tpu_custom_call.1} parent=1 // pred_region
      %58 = dma.done [#allocation6], 1024
    $region29: #{tpu_custom_call.1} parent=1 // pred_fallthru
      _
    %v59 = vld [vmem:[#allocation2] sm:$0xff]
    %v60 = vld [vmem:[#allocation2 + $0x10] sm:$0xff]
    %v61 = vld [vmem:[#allocation2 + $0x20] sm:$0xff]
    %v62 = vld [vmem:[#allocation2 + $0x30] sm:$0xff]
    %v63 = vld [vmem:[#allocation2 + $0x40] sm:$0xff]
    %v64 = vld [vmem:[#allocation2 + $0x50] sm:$0xff]
    %v65 = vld [vmem:[#allocation2 + $0x60] sm:$0xff]
    %v66 = vld [vmem:[#allocation2 + $0x70] sm:$0xff]
    %v67 = vld [vmem:[#allocation2 + $0x80] sm:$0xff]
    %v68 = vld [vmem:[#allocation2 + $0x90] sm:$0xff]
    %v69 = vld [vmem:[#allocation2 + $0xa0] sm:$0xff]
    %v70 = vld [vmem:[#allocation2 + $0xb0] sm:$0xff]
    %v71 = vld [vmem:[#allocation2 + $0xc0] sm:$0xff]
    %v72 = vld [vmem:[#allocation2 + $0xd0] sm:$0xff]
    %v73 = vld [vmem:[#allocation2 + $0xe0] sm:$0xff]
    %v74 = vld [vmem:[#allocation2 + $0xf0] sm:$0xff]
    %s75 = scalar_lea.vmem [#allocation2], 8
    %v76 = vld [vmem:[%s75] sm:$0xff]
    %v77 = vld [vmem:[%s75 + $0x10] sm:$0xff]
    %v78 = vld [vmem:[%s75 + $0x20] sm:$0xff]
    %v79 = vld [vmem:[%s75 + $0x30] sm:$0xff]
    %v80 = vld [vmem:[%s75 + $0x40] sm:$0xff]
    %v81 = vld [vmem:[%s75 + $0x50] sm:$0xff]
    %v82 = vld [vmem:[%s75 + $0x60] sm:$0xff]
    %v83 = vld [vmem:[%s75 + $0x70] sm:$0xff]
    %v84 = vld [vmem:[%s75 + $0x80] sm:$0xff]
    %v85 = vld [vmem:[%s75 + $0x90] sm:$0xff]
    %v86 = vld [vmem:[%s75 + $0xa0] sm:$0xff]
    %v87 = vld [vmem:[%s75 + $0xb0] sm:$0xff]
    %v88 = vld [vmem:[%s75 + $0xc0] sm:$0xff]
    %v89 = vld [vmem:[%s75 + $0xd0] sm:$0xff]
    %v90 = vld [vmem:[%s75 + $0xe0] sm:$0xff]
    %v91 = vld [vmem:[%s75 + $0xf0] sm:$0xff]
    %vm92 = vcmask 523264
    %v93 = vsel %vm92, %v59, 0.0
    %94 = vadd.xlane.f32.xlu0 %v93
    %v95 = vpop.xlane.xlu0 %94
    %v96 = vsel %vm92, %v60, 0.0
    %97 = vadd.xlane.f32.xlu0 %v96
    %v98 = vpop.xlane.xlu0 %97
    %v99 = vsel %vm92, %v61, 0.0
    %100 = vadd.xlane.f32.xlu0 %v99
    %v101 = vpop.xlane.xlu0 %100
    %v102 = vsel %vm92, %v62, 0.0
    %103 = vadd.xlane.f32.xlu0 %v102
    %v104 = vpop.xlane.xlu0 %103
    %v105 = vsel %vm92, %v63, 0.0
    %106 = vadd.xlane.f32.xlu0 %v105
    %v107 = vpop.xlane.xlu0 %106
    %v108 = vsel %vm92, %v64, 0.0
    %109 = vadd.xlane.f32.xlu0 %v108
    %v110 = vpop.xlane.xlu0 %109
    %v111 = vsel %vm92, %v65, 0.0
    %112 = vadd.xlane.f32.xlu0 %v111
    %v113 = vpop.xlane.xlu0 %112
    %v114 = vsel %vm92, %v66, 0.0
    %115 = vadd.xlane.f32.xlu0 %v114
    %v116 = vpop.xlane.xlu0 %115
    %v117 = vsel %vm92, %v67, 0.0
    %118 = vadd.xlane.f32.xlu0 %v117
    %v119 = vpop.xlane.xlu0 %118
    %v120 = vsel %vm92, %v68, 0.0
    %121 = vadd.xlane.f32.xlu0 %v120
    %v122 = vpop.xlane.xlu0 %121
    %v123 = vsel %vm92, %v69, 0.0
    %124 = vadd.xlane.f32.xlu0 %v123
    %v125 = vpop.xlane.xlu0 %124
    %v126 = vsel %vm92, %v70, 0.0
    %127 = vadd.xlane.f32.xlu0 %v126
    %v128 = vpop.xlane.xlu0 %127
    %v129 = vsel %vm92, %v71, 0.0
    %130 = vadd.xlane.f32.xlu0 %v129
    %v131 = vpop.xlane.xlu0 %130
    %v132 = vsel %vm92, %v72, 0.0
    %133 = vadd.xlane.f32.xlu0 %v132
    %v134 = vpop.xlane.xlu0 %133
    %v135 = vsel %vm92, %v73, 0.0
    %136 = vadd.xlane.f32.xlu0 %v135
    %v137 = vpop.xlane.xlu0 %136
    %v138 = vsel %vm92, %v74, 0.0
    %139 = vadd.xlane.f32.xlu0 %v138
    %v140 = vpop.xlane.xlu0 %139
    %v141 = vsel %vm92, %v76, 0.0
    %142 = vadd.xlane.f32.xlu0 %v141
    %v143 = vpop.xlane.xlu0 %142
    %v144 = vsel %vm92, %v77, 0.0
    %145 = vadd.xlane.f32.xlu0 %v144
    %v146 = vpop.xlane.xlu0 %145
    %v147 = vsel %vm92, %v78, 0.0
    %148 = vadd.xlane.f32.xlu0 %v147
    %v149 = vpop.xlane.xlu0 %148
    %v150 = vsel %vm92, %v79, 0.0
    %151 = vadd.xlane.f32.xlu0 %v150
    %v152 = vpop.xlane.xlu0 %151
    %v153 = vsel %vm92, %v80, 0.0
    %154 = vadd.xlane.f32.xlu0 %v153
    %v155 = vpop.xlane.xlu0 %154
    %v156 = vsel %vm92, %v81, 0.0
    %157 = vadd.xlane.f32.xlu0 %v156
    %v158 = vpop.xlane.xlu0 %157
    %v159 = vsel %vm92, %v82, 0.0
    %160 = vadd.xlane.f32.xlu0 %v159
    %v161 = vpop.xlane.xlu0 %160
    %v162 = vsel %vm92, %v83, 0.0
    %163 = vadd.xlane.f32.xlu0 %v162
    %v164 = vpop.xlane.xlu0 %163
    %v165 = vsel %vm92, %v84, 0.0
    %166 = vadd.xlane.f32.xlu0 %v165
    %v167 = vpop.xlane.xlu0 %166
    %v168 = vsel %vm92, %v85, 0.0
    %169 = vadd.xlane.f32.xlu0 %v168
    %v170 = vpop.xlane.xlu0 %169
    %v171 = vsel %vm92, %v86, 0.0
    %172 = vadd.xlane.f32.xlu0 %v171
    %v173 = vpop.xlane.xlu0 %172
    %v174 = vsel %vm92, %v87, 0.0
    %175 = vadd.xlane.f32.xlu0 %v174
    %v176 = vpop.xlane.xlu0 %175
    %v177 = vsel %vm92, %v88, 0.0
    %178 = vadd.xlane.f32.xlu0 %v177
    %v179 = vpop.xlane.xlu0 %178
    %v180 = vsel %vm92, %v89, 0.0
    %181 = vadd.xlane.f32.xlu0 %v180
    %v182 = vpop.xlane.xlu0 %181
    %v183 = vsel %vm92, %v90, 0.0
    %184 = vadd.xlane.f32.xlu0 %v183
    %v185 = vpop.xlane.xlu0 %184
    %v186 = vsel %vm92, %v91, 0.0
    %187 = vadd.xlane.f32.xlu0 %v186
    %v188 = vpop.xlane.xlu0 %187
    %v189 = vadd.f32 %v95, %v143
    %v190 = vadd.f32 %v98, %v146
    %v191 = vadd.f32 %v101, %v149
    %v192 = vadd.f32 %v104, %v152
    %v193 = vadd.f32 %v107, %v155
    %v194 = vadd.f32 %v110, %v158
    %v195 = vadd.f32 %v113, %v161
    %v196 = vadd.f32 %v116, %v164
    %v197 = vadd.f32 %v119, %v167
    %v198 = vadd.f32 %v122, %v170
    %v199 = vadd.f32 %v125, %v173
    %v200 = vadd.f32 %v128, %v176
    %v201 = vadd.f32 %v131, %v179
    %v202 = vadd.f32 %v134, %v182
    %v203 = vadd.f32 %v137, %v185
    %v204 = vadd.f32 %v140, %v188
    %v205 = vmul.f32 %v189, 0.0078125
    %v206 = vmul.f32 %v190, 0.0078125
    %v207 = vmul.f32 %v191, 0.0078125
    %v208 = vmul.f32 %v192, 0.0078125
    %v209 = vmul.f32 %v193, 0.0078125
    %v210 = vmul.f32 %v194, 0.0078125
    %v211 = vmul.f32 %v195, 0.0078125
    %v212 = vmul.f32 %v196, 0.0078125
    %v213 = vmul.f32 %v197, 0.0078125
    %v214 = vmul.f32 %v198, 0.0078125
    %v215 = vmul.f32 %v199, 0.0078125
    %v216 = vmul.f32 %v200, 0.0078125
    %v217 = vmul.f32 %v201, 0.0078125
    %v218 = vmul.f32 %v202, 0.0078125
    %v219 = vmul.f32 %v203, 0.0078125
    %v220 = vmul.f32 %v204, 0.0078125
    %v221 = vsub.f32 %v59, %v205
    %v222 = vsub.f32 %v60, %v206
    %v223 = vsub.f32 %v61, %v207
    %v224 = vsub.f32 %v62, %v208
    %v225 = vsub.f32 %v63, %v209
    %v226 = vsub.f32 %v64, %v210
    %v227 = vsub.f32 %v65, %v211
    %v228 = vsub.f32 %v66, %v212
    %v229 = vsub.f32 %v67, %v213
    %v230 = vsub.f32 %v68, %v214
    %v231 = vsub.f32 %v69, %v215
    %v232 = vsub.f32 %v70, %v216
    %v233 = vsub.f32 %v71, %v217
    %v234 = vsub.f32 %v72, %v218
    %v235 = vsub.f32 %v73, %v219
    %v236 = vsub.f32 %v74, %v220
    %v237 = vsub.f32 %v76, %v205
    %v238 = vsub.f32 %v77, %v206
    %v239 = vsub.f32 %v78, %v207
    %v240 = vsub.f32 %v79, %v208
    %v241 = vsub.f32 %v80, %v209
    %v242 = vsub.f32 %v81, %v210
    %v243 = vsub.f32 %v82, %v211
    %v244 = vsub.f32 %v83, %v212
    %v245 = vsub.f32 %v84, %v213
    %v246 = vsub.f32 %v85, %v214
    %v247 = vsub.f32 %v86, %v215
    %v248 = vsub.f32 %v87, %v216
    %v249 = vsub.f32 %v88, %v217
    %v250 = vsub.f32 %v89, %v218
    %v251 = vsub.f32 %v90, %v219
    %v252 = vsub.f32 %v91, %v220
    %v253 = vmul.f32 %v221, %v221
    %v254 = vmul.f32 %v222, %v222
    %v255 = vmul.f32 %v223, %v223
    %v256 = vmul.f32 %v224, %v224
    %v257 = vmul.f32 %v225, %v225
    %v258 = vmul.f32 %v226, %v226
    %v259 = vmul.f32 %v227, %v227
    %v260 = vmul.f32 %v228, %v228
    %v261 = vmul.f32 %v229, %v229
    %v262 = vmul.f32 %v230, %v230
    %v263 = vmul.f32 %v231, %v231
    %v264 = vmul.f32 %v232, %v232
    %v265 = vmul.f32 %v233, %v233
    %v266 = vmul.f32 %v234, %v234
    %v267 = vmul.f32 %v235, %v235
    %v268 = vmul.f32 %v236, %v236
    %v269 = vsel %vm92, %v253, 0.0
    %270 = vadd.xlane.f32.xlu0 %v269
    %v271 = vpop.xlane.xlu0 %270
    %v272 = vsel %vm92, %v254, 0.0
    %273 = vadd.xlane.f32.xlu0 %v272
    %v274 = vpop.xlane.xlu0 %273
    %v275 = vsel %vm92, %v255, 0.0
    %276 = vadd.xlane.f32.xlu0 %v275
    %v277 = vpop.xlane.xlu0 %276
    %v278 = vsel %vm92, %v256, 0.0
    %279 = vadd.xlane.f32.xlu0 %v278
    %v280 = vpop.xlane.xlu0 %279
    %v281 = vsel %vm92, %v257, 0.0
    %282 = vadd.xlane.f32.xlu0 %v281
    %v283 = vpop.xlane.xlu0 %282
    %v284 = vsel %vm92, %v258, 0.0
    %285 = vadd.xlane.f32.xlu0 %v284
    %v286 = vpop.xlane.xlu0 %285
    %v287 = vsel %vm92, %v259, 0.0
    %288 = vadd.xlane.f32.xlu0 %v287
    %v289 = vpop.xlane.xlu0 %288
    %v290 = vsel %vm92, %v260, 0.0
    %291 = vadd.xlane.f32.xlu0 %v290
    %v292 = vpop.xlane.xlu0 %291
    %v293 = vsel %vm92, %v261, 0.0
    %294 = vadd.xlane.f32.xlu0 %v293
    %v295 = vpop.xlane.xlu0 %294
    %v296 = vsel %vm92, %v262, 0.0
    %297 = vadd.xlane.f32.xlu0 %v296
    %v298 = vpop.xlane.xlu0 %297
    %v299 = vsel %vm92, %v263, 0.0
    %300 = vadd.xlane.f32.xlu0 %v299
    %v301 = vpop.xlane.xlu0 %300
    %v302 = vsel %vm92, %v264, 0.0
    %303 = vadd.xlane.f32.xlu0 %v302
    %v304 = vpop.xlane.xlu0 %303
    %v305 = vsel %vm92, %v265, 0.0
    %306 = vadd.xlane.f32.xlu0 %v305
    %v307 = vpop.xlane.xlu0 %306
    %v308 = vsel %vm92, %v266, 0.0
    %309 = vadd.xlane.f32.xlu0 %v308
    %v310 = vpop.xlane.xlu0 %309
    %v311 = vsel %vm92, %v267, 0.0
    %312 = vadd.xlane.f32.xlu0 %v311
    %v313 = vpop.xlane.xlu0 %312
    %v314 = vsel %vm92, %v268, 0.0
    %315 = vadd.xlane.f32.xlu0 %v314
    %v316 = vpop.xlane.xlu0 %315
    %v317 = vmul.f32 %v237, %v237
    %v318 = vmul.f32 %v238, %v238
    %v319 = vmul.f32 %v239, %v239
    %v320 = vmul.f32 %v240, %v240
    %v321 = vmul.f32 %v241, %v241
    %v322 = vmul.f32 %v242, %v242
    %v323 = vmul.f32 %v243, %v243
    %v324 = vmul.f32 %v244, %v244
    %v325 = vmul.f32 %v245, %v245
    %v326 = vmul.f32 %v246, %v246
    %v327 = vmul.f32 %v247, %v247
    %v328 = vmul.f32 %v248, %v248
    %v329 = vmul.f32 %v249, %v249
    %v330 = vmul.f32 %v250, %v250
    %v331 = vmul.f32 %v251, %v251
    %v332 = vmul.f32 %v252, %v252
    %v333 = vsel %vm92, %v317, 0.0
    %334 = vadd.xlane.f32.xlu0 %v333
    %v335 = vpop.xlane.xlu0 %334
    %v336 = vsel %vm92, %v318, 0.0
    %337 = vadd.xlane.f32.xlu0 %v336
    %v338 = vpop.xlane.xlu0 %337
    %v339 = vsel %vm92, %v319, 0.0
    %340 = vadd.xlane.f32.xlu0 %v339
    %v341 = vpop.xlane.xlu0 %340
    %v342 = vsel %vm92, %v320, 0.0
    %343 = vadd.xlane.f32.xlu0 %v342
    %v344 = vpop.xlane.xlu0 %343
    %v345 = vsel %vm92, %v321, 0.0
    %346 = vadd.xlane.f32.xlu0 %v345
    %v347 = vpop.xlane.xlu0 %346
    %v348 = vsel %vm92, %v322, 0.0
    %349 = vadd.xlane.f32.xlu0 %v348
    %v350 = vpop.xlane.xlu0 %349
    %v351 = vsel %vm92, %v323, 0.0
    %352 = vadd.xlane.f32.xlu0 %v351
    %v353 = vpop.xlane.xlu0 %352
    %v354 = vsel %vm92, %v324, 0.0
    %355 = vadd.xlane.f32.xlu0 %v354
    %v356 = vpop.xlane.xlu0 %355
    %v357 = vsel %vm92, %v325, 0.0
    %358 = vadd.xlane.f32.xlu0 %v357
    %v359 = vpop.xlane.xlu0 %358
    %v360 = vsel %vm92, %v326, 0.0
    %361 = vadd.xlane.f32.xlu0 %v360
    %v362 = vpop.xlane.xlu0 %361
    %v363 = vsel %vm92, %v327, 0.0
    %364 = vadd.xlane.f32.xlu0 %v363
    %v365 = vpop.xlane.xlu0 %364
    %v366 = vsel %vm92, %v328, 0.0
    %367 = vadd.xlane.f32.xlu0 %v366
    %v368 = vpop.xlane.xlu0 %367
    %v369 = vsel %vm92, %v329, 0.0
    %370 = vadd.xlane.f32.xlu0 %v369
    %v371 = vpop.xlane.xlu0 %370
    %v372 = vsel %vm92, %v330, 0.0
    %373 = vadd.xlane.f32.xlu0 %v372
    %v374 = vpop.xlane.xlu0 %373
    %v375 = vsel %vm92, %v331, 0.0
    %376 = vadd.xlane.f32.xlu0 %v375
    %v377 = vpop.xlane.xlu0 %376
    %v378 = vsel %vm92, %v332, 0.0
    %379 = vadd.xlane.f32.xlu0 %v378
    %v380 = vpop.xlane.xlu0 %379
    %v381 = vadd.f32 %v271, %v335
    %v382 = vadd.f32 %v274, %v338
    %v383 = vadd.f32 %v277, %v341
    %v384 = vadd.f32 %v280, %v344
    %v385 = vadd.f32 %v283, %v347
    %v386 = vadd.f32 %v286, %v350
    %v387 = vadd.f32 %v289, %v353
    %v388 = vadd.f32 %v292, %v356
    %v389 = vadd.f32 %v295, %v359
    %v390 = vadd.f32 %v298, %v362
    %v391 = vadd.f32 %v301, %v365
    %v392 = vadd.f32 %v304, %v368
    %v393 = vadd.f32 %v307, %v371
    %v394 = vadd.f32 %v310, %v374
    %v395 = vadd.f32 %v313, %v377
    %v396 = vadd.f32 %v316, %v380
    %v397 = vmul.f32 %v381, 0.0078125
    %v398 = vmul.f32 %v382, 0.0078125
    %v399 = vmul.f32 %v383, 0.0078125
    %v400 = vmul.f32 %v384, 0.0078125
    %v401 = vmul.f32 %v385, 0.0078125
    %v402 = vmul.f32 %v386, 0.0078125
    %v403 = vmul.f32 %v387, 0.0078125
    %v404 = vmul.f32 %v388, 0.0078125
    %v405 = vmul.f32 %v389, 0.0078125
    %v406 = vmul.f32 %v390, 0.0078125
    %v407 = vmul.f32 %v391, 0.0078125
    %v408 = vmul.f32 %v392, 0.0078125
    %v409 = vmul.f32 %v393, 0.0078125
    %v410 = vmul.f32 %v394, 0.0078125
    %v411 = vmul.f32 %v395, 0.0078125
    %v412 = vmul.f32 %v396, 0.0078125
    %v413 = vadd.f32 %v397, 1e-05
    %v414 = vadd.f32 %v398, 1e-05
    %v415 = vadd.f32 %v399, 1e-05
    %v416 = vadd.f32 %v400, 1e-05
    %v417 = vadd.f32 %v401, 1e-05
    %v418 = vadd.f32 %v402, 1e-05
    %v419 = vadd.f32 %v403, 1e-05
    %v420 = vadd.f32 %v404, 1e-05
    %v421 = vadd.f32 %v405, 1e-05
    %v422 = vadd.f32 %v406, 1e-05
    %v423 = vadd.f32 %v407, 1e-05
    %v424 = vadd.f32 %v408, 1e-05
    %v425 = vadd.f32 %v409, 1e-05
    %v426 = vadd.f32 %v410, 1e-05
    %v427 = vadd.f32 %v411, 1e-05
    %v428 = vadd.f32 %v412, 1e-05
    %v429 = vrsqrt.pop %v413
    %v430 = vrsqrt.pop %v414
    %v431 = vrsqrt.pop %v415
    %v432 = vrsqrt.pop %v416
    %v433 = vrsqrt.pop %v417
    %v434 = vrsqrt.pop %v418
    %v435 = vrsqrt.pop %v419
    %v436 = vrsqrt.pop %v420
    %v437 = vrsqrt.pop %v421
    %v438 = vrsqrt.pop %v422
    %v439 = vrsqrt.pop %v423
    %v440 = vrsqrt.pop %v424
    %v441 = vrsqrt.pop %v425
    %v442 = vrsqrt.pop %v426
    %v443 = vrsqrt.pop %v427
    %v444 = vrsqrt.pop %v428
    %v445 = vmul.f32 %v221, %v429
    %v446 = vmul.f32 %v222, %v430
    %v447 = vmul.f32 %v223, %v431
    %v448 = vmul.f32 %v224, %v432
    %v449 = vmul.f32 %v225, %v433
    %v450 = vmul.f32 %v226, %v434
    %v451 = vmul.f32 %v227, %v435
    %v452 = vmul.f32 %v228, %v436
    %v453 = vmul.f32 %v229, %v437
    %v454 = vmul.f32 %v230, %v438
    %v455 = vmul.f32 %v231, %v439
    %v456 = vmul.f32 %v232, %v440
    %v457 = vmul.f32 %v233, %v441
    %v458 = vmul.f32 %v234, %v442
    %v459 = vmul.f32 %v235, %v443
    %v460 = vmul.f32 %v236, %v444
    %v461 = vmul.f32 %v237, %v429
    %v462 = vmul.f32 %v238, %v430
    %v463 = vmul.f32 %v239, %v431
    %v464 = vmul.f32 %v240, %v432
    %v465 = vmul.f32 %v241, %v433
    %v466 = vmul.f32 %v242, %v434
    %v467 = vmul.f32 %v243, %v435
    %v468 = vmul.f32 %v244, %v436
    %v469 = vmul.f32 %v245, %v437
    %v470 = vmul.f32 %v246, %v438
    %v471 = vmul.f32 %v247, %v439
    %v472 = vmul.f32 %v248, %v440
    %v473 = vmul.f32 %v249, %v441
    %v474 = vmul.f32 %v250, %v442
    %v475 = vmul.f32 %v251, %v443
    %v476 = vmul.f32 %v252, %v444
    %v477 = vld [vmem:[#allocation5] sm:$0xff]
    %v478 = vld [vmem:[#allocation5 + $0x8] sm:$0xff]
    %v479 = vld [vmem:[#allocation5 + $0x10] sm:$0xff]
    %v480 = vld [vmem:[#allocation5 + $0x18] sm:$0xff]
    %v481 = vld [vmem:[#allocation5 + $0x20] sm:$0xff]
    %v482 = vld [vmem:[#allocation5 + $0x28] sm:$0xff]
    %v483 = vld [vmem:[#allocation5 + $0x30] sm:$0xff]
    %v484 = vld [vmem:[#allocation5 + $0x38] sm:$0xff]
    %v485 = vld [vmem:[#allocation7] sm:$0xff]
    %v486 = vld [vmem:[#allocation7 + $0x8] sm:$0xff]
    %v487 = vld [vmem:[#allocation7 + $0x10] sm:$0xff]
    %v488 = vld [vmem:[#allocation7 + $0x18] sm:$0xff]
    %v489 = vld [vmem:[#allocation7 + $0x20] sm:$0xff]
    %v490 = vld [vmem:[#allocation7 + $0x28] sm:$0xff]
    %v491 = vld [vmem:[#allocation7 + $0x30] sm:$0xff]
    %v492 = vld [vmem:[#allocation7 + $0x38] sm:$0xff]
    %v494 = vsel %vm92, %v461, 0
    %v497 = vsel %vm92, %v462, 0
    %v500 = vsel %vm92, %v463, 0
    %v503 = vsel %vm92, %v464, 0
    %v506 = vsel %vm92, %v465, 0
    %v509 = vsel %vm92, %v466, 0
    %v512 = vsel %vm92, %v467, 0
    %v515 = vsel %vm92, %v468, 0
    %v518 = vsel %vm92, %v469, 0
    %v521 = vsel %vm92, %v470, 0
    %v524 = vsel %vm92, %v471, 0
    %v527 = vsel %vm92, %v472, 0
    %v530 = vsel %vm92, %v473, 0
    %v533 = vsel %vm92, %v474, 0
    %v536 = vsel %vm92, %v475, 0
    %v539 = vsel %vm92, %v476, 0
    %541 = vmatprep.subr.mxu0 0.0
    %542 = vmatpush1.msra.mxu0 %v485
    %543 = vmatprep.subr.mxu0 0.0
    %544 = vmatpush1.msra.mxu0 %v486
    %545 = vmatprep.subr.mxu0 0.0
    %546 = vmatpush1.msra.mxu0 %v487
    %547 = vmatprep.subr.mxu0 0.0
    %548 = vmatpush1.msra.mxu0 %v488
    %549 = vmatprep.subr.mxu0 0.0
    %550 = vmatpush1.msra.mxu0 %v489
    %551 = vmatprep.subr.mxu0 0.0
    %552 = vmatpush1.msra.mxu0 %v490
    %553 = vmatprep.subr.mxu0 0.0
    %554 = vmatpush1.msra.mxu0 %v491
    %555 = vmatprep.subr.mxu0 0.0
    %556 = vmatpush1.msra.mxu0 %v492
    %557 = vmatprep.subr.mxu0 0.0
    %558 = vmatpush1.msra.mxu0 0.0
    %559 = vmatprep.subr.mxu0 0.0
    %560 = vmatpush1.msra.mxu0 0.0
    %561 = vmatprep.subr.mxu0 0.0
    %562 = vmatpush1.msra.mxu0 0.0
    %563 = vmatprep.subr.mxu0 0.0
    %564 = vmatpush1.msra.mxu0 0.0
    %565 = vmatprep.subr.mxu0 0.0
    %566 = vmatpush1.msra.mxu0 0.0
    %567 = vmatprep.subr.mxu0 0.0
    %568 = vmatpush1.msra.mxu0 0.0
    %569 = vmatprep.subr.mxu0 0.0
    %570 = vmatpush1.msra.mxu0 0.0
    %571 = vmatprep.subr.mxu0 0.0
    %572 = vmatpush1.msra.mxu0 0.0
    %573 = vmatprep.subr.mxu0 0.0
    %574 = vmatpush1.msra.mxu0 0.0
    %575 = vmatprep.subr.mxu0 0.0
    %576 = vmatpush1.msra.mxu0 0.0
    %577 = vmatprep.subr.mxu0 0.0
    %578 = vmatpush1.msra.mxu0 0.0
    %579 = vmatprep.subr.mxu0 0.0
    %580 = vmatpush1.msra.mxu0 0.0
    %581 = vmatprep.subr.mxu0 0.0
    %582 = vmatpush1.msra.mxu0 0.0
    %583 = vmatprep.subr.mxu0 0.0
    %584 = vmatpush1.msra.mxu0 0.0
    %585 = vmatprep.subr.mxu0 0.0
    %586 = vmatpush1.msra.mxu0 0.0
    %587 = vmatprep.subr.mxu0 0.0
    %588 = vmatpush1.msra.mxu0 0.0
    %589 = vmatprep.subr.mxu0 0.0
    %590 = vmatpush1.msra.mxu0 0.0
    %591 = vmatprep.subr.mxu0 0.0
    %592 = vmatpush1.msra.mxu0 0.0
    %593 = vmatprep.subr.mxu0 0.0
    %594 = vmatpush1.msra.mxu0 0.0
    %595 = vmatprep.subr.mxu0 0.0
    %596 = vmatpush1.msra.mxu0 0.0
    %597 = vmatprep.subr.mxu0 0.0
    %598 = vmatpush1.msra.mxu0 0.0
    %599 = vmatprep.subr.mxu0 0.0
    %600 = vmatpush1.msra.mxu0 0.0
    %601 = vmatprep.subr.mxu0 0.0
    %602 = vmatpush1.msra.mxu0 0.0
    %603 = vmatprep.subr.mxu0 0.0
    %604 = vmatpush1.msra.mxu0 0.0
    %605 = vmatprep.mubr.f32.mxu0 0.0
    %606 = vmatmul.mubr.f32.gmra.mrb[0].mxu0 %v494
    %v607 = vpop.f32.mrb[0].mxu0
    %v608 = vadd.f32 0.0, %v607
    %v609 = vpop.f32.mrb[0].mxu0
    %610 = vmatprep.mubr.f32.mxu0 0.0
    %611 = vmatmul.mubr.f32.gmra.mrb[0].mxu0 %v497
    %v612 = vpop.f32.mrb[0].mxu0
    %v613 = vadd.f32 0.0, %v612
    %v614 = vpop.f32.mrb[0].mxu0
    %615 = vmatprep.mubr.f32.mxu0 0.0
    %616 = vmatmul.mubr.f32.gmra.mrb[0].mxu0 %v500
    %v617 = vpop.f32.mrb[0].mxu0
    %v618 = vadd.f32 0.0, %v617
    %v619 = vpop.f32.mrb[0].mxu0
    %620 = vmatprep.mubr.f32.mxu0 0.0
    %621 = vmatmul.mubr.f32.gmra.mrb[0].mxu0 %v503
    %v622 = vpop.f32.mrb[0].mxu0
    %v623 = vadd.f32 0.0, %v622
    %v624 = vpop.f32.mrb[0].mxu0
    %625 = vmatprep.mubr.f32.mxu0 0.0
    %626 = vmatmul.mubr.f32.gmra.mrb[0].mxu0 %v506
    %v627 = vpop.f32.mrb[0].mxu0
    %v628 = vadd.f32 0.0, %v627
    %v629 = vpop.f32.mrb[0].mxu0
    %630 = vmatprep.mubr.f32.mxu0 0.0
    %631 = vmatmul.mubr.f32.gmra.mrb[0].mxu0 %v509
    %v632 = vpop.f32.mrb[0].mxu0
    %v633 = vadd.f32 0.0, %v632
    %v634 = vpop.f32.mrb[0].mxu0
    %635 = vmatprep.mubr.f32.mxu0 0.0
    %636 = vmatmul.mubr.f32.gmra.mrb[0].mxu0 %v512
    %v637 = vpop.f32.mrb[0].mxu0
    %v638 = vadd.f32 0.0, %v637
    %v639 = vpop.f32.mrb[0].mxu0
    %640 = vmatprep.mubr.f32.mxu0 0.0
    %641 = vmatmul.mubr.f32.gmra.mrb[0].mxu0 %v515
    %v642 = vpop.f32.mrb[0].mxu0
    %v643 = vadd.f32 0.0, %v642
    %v644 = vpop.f32.mrb[0].mxu0
    %645 = vmatprep.mubr.f32.mxu0 0.0
    %646 = vmatmul.mubr.f32.gmra.mrb[0].mxu0 %v518
    %v647 = vpop.f32.mrb[0].mxu0
    %v648 = vadd.f32 0.0, %v647
    %v649 = vpop.f32.mrb[0].mxu0
    %650 = vmatprep.mubr.f32.mxu0 0.0
    %651 = vmatmul.mubr.f32.gmra.mrb[0].mxu0 %v521
    %v652 = vpop.f32.mrb[0].mxu0
    %v653 = vadd.f32 0.0, %v652
    %v654 = vpop.f32.mrb[0].mxu0
    %655 = vmatprep.mubr.f32.mxu0 0.0
    %656 = vmatmul.mubr.f32.gmra.mrb[0].mxu0 %v524
    %v657 = vpop.f32.mrb[0].mxu0
    %v658 = vadd.f32 0.0, %v657
    %v659 = vpop.f32.mrb[0].mxu0
    %660 = vmatprep.mubr.f32.mxu0 0.0
    %661 = vmatmul.mubr.f32.gmra.mrb[0].mxu0 %v527
    %v662 = vpop.f32.mrb[0].mxu0
    %v663 = vadd.f32 0.0, %v662
    %v664 = vpop.f32.mrb[0].mxu0
    %665 = vmatprep.mubr.f32.mxu0 0.0
    %666 = vmatmul.mubr.f32.gmra.mrb[0].mxu0 %v530
    %v667 = vpop.f32.mrb[0].mxu0
    %v668 = vadd.f32 0.0, %v667
    %v669 = vpop.f32.mrb[0].mxu0
    %670 = vmatprep.mubr.f32.mxu0 0.0
    %671 = vmatmul.mubr.f32.gmra.mrb[0].mxu0 %v533
    %v672 = vpop.f32.mrb[0].mxu0
    %v673 = vadd.f32 0.0, %v672
    %v674 = vpop.f32.mrb[0].mxu0
    %675 = vmatprep.mubr.f32.mxu0 0.0
    %676 = vmatmul.mubr.f32.gmra.mrb[0].mxu0 %v536
    %v677 = vpop.f32.mrb[0].mxu0
    %v678 = vadd.f32 0.0, %v677
    %v679 = vpop.f32.mrb[0].mxu0
    %680 = vmatprep.mubr.f32.mxu0 0.0
    %681 = vmatmul.mubr.f32.gmra.mrb[0].mxu0 %v539
    %v682 = vpop.f32.mrb[0].mxu0
    %v683 = vadd.f32 0.0, %v682
    %v684 = vpop.f32.mrb[0].mxu0
    %685 = vdwg.mxu0
    %v687 = vsel %vm92, %v445, 0
    %v690 = vsel %vm92, %v446, 0
    %v693 = vsel %vm92, %v447, 0
    %v696 = vsel %vm92, %v448, 0
    %v699 = vsel %vm92, %v449, 0
    %v702 = vsel %vm92, %v450, 0
    %v705 = vsel %vm92, %v451, 0
    %v708 = vsel %vm92, %v452, 0
    %v711 = vsel %vm92, %v453, 0
    %v714 = vsel %vm92, %v454, 0
    %v717 = vsel %vm92, %v455, 0
    %v720 = vsel %vm92, %v456, 0
    %v723 = vsel %vm92, %v457, 0
    %v726 = vsel %vm92, %v458, 0
    %v729 = vsel %vm92, %v459, 0
    %v732 = vsel %vm92, %v460, 0
    %734 = vmatprep.subr.mxu0 0.0
    %735 = vmatpush1.msra.mxu0 %v477
    %736 = vmatprep.subr.mxu0 0.0
    %737 = vmatpush1.msra.mxu0 %v478
    %738 = vmatprep.subr.mxu0 0.0
    %739 = vmatpush1.msra.mxu0 %v479
    %740 = vmatprep.subr.mxu0 0.0
    %741 = vmatpush1.msra.mxu0 %v480
    %742 = vmatprep.subr.mxu0 0.0
    %743 = vmatpush1.msra.mxu0 %v481
    %744 = vmatprep.subr.mxu0 0.0
    %745 = vmatpush1.msra.mxu0 %v482
    %746 = vmatprep.subr.mxu0 0.0
    %747 = vmatpush1.msra.mxu0 %v483
    %748 = vmatprep.subr.mxu0 0.0
    %749 = vmatpush1.msra.mxu0 %v484
    %750 = vmatprep.subr.mxu0 0.0
    %751 = vmatpush1.msra.mxu0 0.0
    %752 = vmatprep.subr.mxu0 0.0
    %753 = vmatpush1.msra.mxu0 0.0
    %754 = vmatprep.subr.mxu0 0.0
    %755 = vmatpush1.msra.mxu0 0.0
    %756 = vmatprep.subr.mxu0 0.0
    %757 = vmatpush1.msra.mxu0 0.0
    %758 = vmatprep.subr.mxu0 0.0
    %759 = vmatpush1.msra.mxu0 0.0
    %760 = vmatprep.subr.mxu0 0.0
    %761 = vmatpush1.msra.mxu0 0.0
    %762 = vmatprep.subr.mxu0 0.0
    %763 = vmatpush1.msra.mxu0 0.0
    %764 = vmatprep.subr.mxu0 0.0
    %765 = vmatpush1.msra.mxu0 0.0
    %766 = vmatprep.subr.mxu0 0.0
    %767 = vmatpush1.msra.mxu0 0.0
    %768 = vmatprep.subr.mxu0 0.0
    %769 = vmatpush1.msra.mxu0 0.0
    %770 = vmatprep.subr.mxu0 0.0
    %771 = vmatpush1.msra.mxu0 0.0
    %772 = vmatprep.subr.mxu0 0.0
    %773 = vmatpush1.msra.mxu0 0.0
    %774 = vmatprep.subr.mxu0 0.0
    %775 = vmatpush1.msra.mxu0 0.0
    %776 = vmatprep.subr.mxu0 0.0
    %777 = vmatpush1.msra.mxu0 0.0
    %778 = vmatprep.subr.mxu0 0.0
    %779 = vmatpush1.msra.mxu0 0.0
    %780 = vmatprep.subr.mxu0 0.0
    %781 = vmatpush1.msra.mxu0 0.0
    %782 = vmatprep.subr.mxu0 0.0
    %783 = vmatpush1.msra.mxu0 0.0
    %784 = vmatprep.subr.mxu0 0.0
    %785 = vmatpush1.msra.mxu0 0.0
    %786 = vmatprep.subr.mxu0 0.0
    %787 = vmatpush1.msra.mxu0 0.0
    %788 = vmatprep.subr.mxu0 0.0
    %789 = vmatpush1.msra.mxu0 0.0
    %790 = vmatprep.subr.mxu0 0.0
    %791 = vmatpush1.msra.mxu0 0.0
    %792 = vmatprep.subr.mxu0 0.0
    %793 = vmatpush1.msra.mxu0 0.0
    %794 = vmatprep.subr.mxu0 0.0
    %795 = vmatpush1.msra.mxu0 0.0
    %796 = vmatprep.subr.mxu0 0.0
    %797 = vmatpush1.msra.mxu0 0.0
    %798 = vmatprep.mubr.f32.mxu0 0.0
    %799 = vmatmul.mubr.f32.gmra.mrb[0].mxu0 %v687
    %v800 = vpop.f32.mrb[0].mxu0
    %v801 = vadd.f32 %v608, %v800
    %v802 = vpop.f32.mrb[0].mxu0
    %803 = vmatprep.mubr.f32.mxu0 0.0
    %804 = vmatmul.mubr.f32.gmra.mrb[0].mxu0 %v690
    %v805 = vpop.f32.mrb[0].mxu0
    %v806 = vadd.f32 %v613, %v805
    %v807 = vpop.f32.mrb[0].mxu0
    %808 = vmatprep.mubr.f32.mxu0 0.0
    %809 = vmatmul.mubr.f32.gmra.mrb[0].mxu0 %v693
    %v810 = vpop.f32.mrb[0].mxu0
    %v811 = vadd.f32 %v618, %v810
    %v812 = vpop.f32.mrb[0].mxu0
    %813 = vmatprep.mubr.f32.mxu0 0.0
    %814 = vmatmul.mubr.f32.gmra.mrb[0].mxu0 %v696
    %v815 = vpop.f32.mrb[0].mxu0
    %v816 = vadd.f32 %v623, %v815
    %v817 = vpop.f32.mrb[0].mxu0
    %818 = vmatprep.mubr.f32.mxu0 0.0
    %819 = vmatmul.mubr.f32.gmra.mrb[0].mxu0 %v699
    %v820 = vpop.f32.mrb[0].mxu0
    %v821 = vadd.f32 %v628, %v820
    %v822 = vpop.f32.mrb[0].mxu0
    %823 = vmatprep.mubr.f32.mxu0 0.0
    %824 = vmatmul.mubr.f32.gmra.mrb[0].mxu0 %v702
    %v825 = vpop.f32.mrb[0].mxu0
    %v826 = vadd.f32 %v633, %v825
    %v827 = vpop.f32.mrb[0].mxu0
    %828 = vmatprep.mubr.f32.mxu0 0.0
    %829 = vmatmul.mubr.f32.gmra.mrb[0].mxu0 %v705
    %v830 = vpop.f32.mrb[0].mxu0
    %v831 = vadd.f32 %v638, %v830
    %v832 = vpop.f32.mrb[0].mxu0
    %833 = vmatprep.mubr.f32.mxu0 0.0
    %834 = vmatmul.mubr.f32.gmra.mrb[0].mxu0 %v708
    %v835 = vpop.f32.mrb[0].mxu0
    %v836 = vadd.f32 %v643, %v835
    %v837 = vpop.f32.mrb[0].mxu0
    %838 = vmatprep.mubr.f32.mxu0 0.0
    %839 = vmatmul.mubr.f32.gmra.mrb[0].mxu0 %v711
    %v840 = vpop.f32.mrb[0].mxu0
    %v841 = vadd.f32 %v648, %v840
    %v842 = vpop.f32.mrb[0].mxu0
    %843 = vmatprep.mubr.f32.mxu0 0.0
    %844 = vmatmul.mubr.f32.gmra.mrb[0].mxu0 %v714
    %v845 = vpop.f32.mrb[0].mxu0
    %v846 = vadd.f32 %v653, %v845
    %v847 = vpop.f32.mrb[0].mxu0
    %848 = vmatprep.mubr.f32.mxu0 0.0
    %849 = vmatmul.mubr.f32.gmra.mrb[0].mxu0 %v717
    %v850 = vpop.f32.mrb[0].mxu0
    %v851 = vadd.f32 %v658, %v850
    %v852 = vpop.f32.mrb[0].mxu0
    %853 = vmatprep.mubr.f32.mxu0 0.0
    %854 = vmatmul.mubr.f32.gmra.mrb[0].mxu0 %v720
    %v855 = vpop.f32.mrb[0].mxu0
    %v856 = vadd.f32 %v663, %v855
    %v857 = vpop.f32.mrb[0].mxu0
    %858 = vmatprep.mubr.f32.mxu0 0.0
    %859 = vmatmul.mubr.f32.gmra.mrb[0].mxu0 %v723
    %v860 = vpop.f32.mrb[0].mxu0
    %v861 = vadd.f32 %v668, %v860
    %v862 = vpop.f32.mrb[0].mxu0
    %863 = vmatprep.mubr.f32.mxu0 0.0
    %864 = vmatmul.mubr.f32.gmra.mrb[0].mxu0 %v726
    %v865 = vpop.f32.mrb[0].mxu0
    %v866 = vadd.f32 %v673, %v865
    %v867 = vpop.f32.mrb[0].mxu0
    %868 = vmatprep.mubr.f32.mxu0 0.0
    %869 = vmatmul.mubr.f32.gmra.mrb[0].mxu0 %v729
    %v870 = vpop.f32.mrb[0].mxu0
    %v871 = vadd.f32 %v678, %v870
    %v872 = vpop.f32.mrb[0].mxu0
    %873 = vmatprep.mubr.f32.mxu0 0.0
    %874 = vmatmul.mubr.f32.gmra.mrb[0].mxu0 %v732
    %v875 = vpop.f32.mrb[0].mxu0
    %v876 = vadd.f32 %v683, %v875
    %v877 = vpop.f32.mrb[0].mxu0
    %878 = vdwg.mxu0
    %v879 = vld [vmem:[%s3] sm:$0x1]
    %v881 = vlaneseq
    %v882 = vshrl.u32 %v881, 7
    %v883 = vsub.s32 0, %v882
    %v884 = vrot.slane %v879, %v883
    %v886 = vadd.f32 %v801, %v884
    %v887 = vadd.f32 %v806, %v884
    %v888 = vadd.f32 %v811, %v884
    %v889 = vadd.f32 %v816, %v884
    %v890 = vadd.f32 %v821, %v884
    %v891 = vadd.f32 %v826, %v884
    %v892 = vadd.f32 %v831, %v884
    %v893 = vadd.f32 %v836, %v884
    %v894 = vadd.f32 %v841, %v884
    %v895 = vadd.f32 %v846, %v884
    %v896 = vadd.f32 %v851, %v884
    %v897 = vadd.f32 %v856, %v884
    %v898 = vadd.f32 %v861, %v884
    %v899 = vadd.f32 %v866, %v884
    %v900 = vadd.f32 %v871, %v884
    %v901 = vadd.f32 %v876, %v884
    %902 = vst [vmem:[#allocation8] sm:$0xff] %v886
    %903 = vst [vmem:[#allocation8 + $0x8] sm:$0xff] %v887
    %904 = vst [vmem:[#allocation8 + $0x10] sm:$0xff] %v888
    %905 = vst [vmem:[#allocation8 + $0x18] sm:$0xff] %v889
    %906 = vst [vmem:[#allocation8 + $0x20] sm:$0xff] %v890
    %907 = vst [vmem:[#allocation8 + $0x28] sm:$0xff] %v891
    %908 = vst [vmem:[#allocation8 + $0x30] sm:$0xff] %v892
    %909 = vst [vmem:[#allocation8 + $0x38] sm:$0xff] %v893
    %910 = vst [vmem:[#allocation8 + $0x40] sm:$0xff] %v894
    %911 = vst [vmem:[#allocation8 + $0x48] sm:$0xff] %v895
    %912 = vst [vmem:[#allocation8 + $0x50] sm:$0xff] %v896
    %913 = vst [vmem:[#allocation8 + $0x58] sm:$0xff] %v897
    %914 = vst [vmem:[#allocation8 + $0x60] sm:$0xff] %v898
    %915 = vst [vmem:[#allocation8 + $0x68] sm:$0xff] %v899
    %916 = vst [vmem:[#allocation8 + $0x70] sm:$0xff] %v900
    %917 = vst [vmem:[#allocation8 + $0x78] sm:$0xff] %v901
    // Predicated region
    $region30: #{tpu_custom_call.1} parent=1 // pred_check
      _
    $region31: #{tpu_custom_call.1} parent=1 // pred_check_branch
      %919 = sbr.rel (0) target = $region33
    $region32: #{tpu_custom_call.1} parent=1 // pred_region
      %s921 = ssub.s32 2048, 2048
      %922 = vsyncadd [#allocation4], %s921
      %s923 = sshll.u32 [#allocation8], 4
      %s924 = int_to_ptr.vmem [resolvable:$true] %s923
      %929 = dma.vmem_to_hbm [thread:$0]  %s924, 2048, %s4, [#allocation4], 128, 128, 8
    $region33: #{tpu_custom_call.1} parent=1 // pred_fallthru
      _
    // Predicated region
    $region34: #{tpu_custom_call.1} parent=1 // pred_check
      _
    $region35: #{tpu_custom_call.1} parent=1 // pred_check_branch
      %931 = sbr.rel (0) target = $region37
    $region36: #{tpu_custom_call.1} parent=1 // pred_region
      %932 = dma.done [#allocation4], 2048
    $region37: #{tpu_custom_call.1} parent=1 // pred_fallthru
      _
    %933 = vsyncpa [#allocation3], 1
    %934 = vsyncpa [#allocation6], 1
    %935 = vsyncpa [#allocation4], 1

</llo_original>
